<compile_context>
chip_gen: v7x
topology: tpu7x:2x2x1
jax: 0.10.0
libtpu: 0.0.40
codegen_flags: <defaults>
</compile_context>

<pallas_src>
import jax
import jax.numpy as jnp
from jax.experimental import pallas as pl
from jax.experimental.pallas import tpu as pltpu


def ensemble_reward_head(x, w1, b1, w2, b2):
    """x: (B,H); w1: (n,H,H2); b1: (n,1,H2); w2: (n,H2,O); b2: (n,1,O)."""
    num_heads, H, H2 = w1.shape
    O = w2.shape[-1]
    B = x.shape[0]

    # ---- wrapper-side weight fusion (tiny, done once per call) ----
    # Layer 1: concatenate head output columns -> (H, num_heads*H2)
    w1_cat = jnp.transpose(w1, (1, 0, 2)).reshape(H, num_heads * H2)
    b1_cat = b1.reshape(1, num_heads * H2)
    # Layer 2: block-diagonal -> (num_heads*H2, num_heads*O)
    eye = jnp.eye(num_heads, dtype=w2.dtype)
    w2_bd = (w2[:, :, None, :] * eye[:, None, :, None]).reshape(
        num_heads * H2, num_heads * O)
    b2_cat = b2.reshape(1, num_heads * O)

    def kernel(x_ref, w1_ref, b1_ref, w2_ref, b2_ref, out_ref):
        xv = x_ref[...]                                                 # (B, H)
        hid = jnp.dot(xv, w1_ref[...],
                      preferred_element_type=jnp.float32) + b1_ref[...]  # (B, n*H2)
        hid = jnp.maximum(hid, 0.0)                                     # ReLU
        # TODO(synk): nn.Dropout treated as identity (eval-mode semantics).
        preds = jnp.dot(hid, w2_ref[...],
                        preferred_element_type=jnp.float32) + b2_ref[...]  # (B, n*O)
        # preds columns are head-major blocks of width O; static slices per head.
        heads = [preds[:, h * O:(h + 1) * O] for h in range(num_heads)]
        mean = sum(heads) / float(num_heads)
        # exact two-pass unbiased variance (torch.std default: correction = 1)
        var = sum((p - mean) * (p - mean) for p in heads) / float(num_heads - 1)
        std = jnp.sqrt(var)
        out_ref[...] = jnp.concatenate([mean, std], axis=-1).astype(out_ref.dtype)

    out = pl.pallas_call(
        kernel,
        out_shape=jax.ShapeDtypeStruct((B, 2 * O), x.dtype),
        in_specs=[pl.BlockSpec(memory_space=pltpu.MemorySpace.VMEM)] * 5,
        out_specs=pl.BlockSpec(memory_space=pltpu.MemorySpace.VMEM),
    )(x, w1_cat, b1_cat, w2_bd, b2_cat)

    return out[:, :O], out[:, O:]


def reference(x, w1, b1, w2, b2):
    # pure-JAX reference of the PyTorch forward (eval mode)
    hid = jnp.maximum(jnp.einsum('bh,nhk->nbk', x, w1) + b1, 0.0)
    preds = jnp.einsum('nbk,nko->nbo', hid, w2) + b2           # (num_heads, B, O)
    mean = preds.mean(axis=0)
    std = preds.std(axis=0, ddof=1)
    return mean, std


if __name__ == "__main__":
    # module config: hidden_size=32, num_objectives=1, num_heads=5
    hidden_size = 32
    num_objectives = 1
    num_heads = 5
    batch = 8

    key = jax.random.PRNGKey(0)
    kx, k1, k2, k3, k4 = jax.random.split(key, 5)

    H, H2, O = hidden_size, hidden_size // 2, num_objectives
    x = jax.random.normal(kx, (batch, H), dtype=jnp.float32)

    # deterministic synthetic parameters (uniform like PyTorch Linear init)
    lim1 = 1.0 / (H ** 0.5)
    lim2 = 1.0 / (H2 ** 0.5)
    w1 = jax.random.uniform(k1, (num_heads, H, H2), jnp.float32, -lim1, lim1)
    b1 = jax.random.uniform(k2, (num_heads, 1, H2), jnp.float32, -lim1, lim1)
    w2 = jax.random.uniform(k3, (num_heads, H2, O), jnp.float32, -lim2, lim2)
    b2 = jax.random.uniform(k4, (num_heads, 1, O), jnp.float32, -lim2, lim2)

    mean_out, std_out = ensemble_reward_head(x, w1, b1, w2, b2)
    jax.block_until_ready((mean_out, std_out))

    mean_ref, std_ref = reference(x, w1, b1, w2, b2)
    assert jnp.allclose(mean_out, mean_ref, atol=1e-5, rtol=1e-5), "mean mismatch"
    assert jnp.allclose(std_out, std_ref, atol=1e-5, rtol=1e-5), "std mismatch"

    print("KERNEL_OK")
</pallas_src>

<mosaic_0001>
module attributes {stable_mosaic.version = 11 : i64} {
  func.func @kernel(%arg0: memref<8x32xf32, #tpu.memory_space<vmem>>, %arg1: memref<32x80xf32, #tpu.memory_space<vmem>>, %arg2: memref<1x80xf32, #tpu.memory_space<vmem>>, %arg3: memref<80x5xf32, #tpu.memory_space<vmem>>, %arg4: memref<1x5xf32, #tpu.memory_space<vmem>>, %arg5: memref<8x2xf32, #tpu.memory_space<vmem>>) attributes {dimension_semantics = [], scalar_prefetch = 0 : i64, scratch_operands = 0 : i64, tpu.core_type = #tpu.core_type<tc>} {
    %c0 = arith.constant 0 : index
    %c0_0 = arith.constant 0 : index
    %0 = vector.load %arg0[%c0, %c0_0] : memref<8x32xf32, #tpu.memory_space<vmem>>, vector<8x32xf32>
    %c0_1 = arith.constant 0 : index
    %c0_2 = arith.constant 0 : index
    %1 = vector.load %arg1[%c0_1, %c0_2] : memref<32x80xf32, #tpu.memory_space<vmem>>, vector<32x80xf32>
    %cst = arith.constant dense<0.000000e+00> : vector<8x80xf32>
    %2 = tpu.matmul %0, %1, %cst {dimension_numbers = #tpu.dot_dimension_numbers<[1], [0], [0], [1], [0, 0, 1, 1], [], []>} : vector<8x32xf32>, vector<32x80xf32>, vector<8x80xf32> -> vector<8x80xf32>
    %c0_3 = arith.constant 0 : index
    %c0_4 = arith.constant 0 : index
    %3 = vector.load %arg2[%c0_3, %c0_4] : memref<1x80xf32, #tpu.memory_space<vmem>>, vector<1x80xf32>
    %4 = vector.broadcast %3 : vector<1x80xf32> to vector<8x80xf32>
    %5 = arith.addf %2, %4 : vector<8x80xf32>
    %cst_5 = arith.constant 0.000000e+00 : f32
    %6 = vector.broadcast %cst_5 : f32 to vector<8x80xf32>
    %7 = arith.maximumf %5, %6 : vector<8x80xf32>
    %c0_6 = arith.constant 0 : index
    %c0_7 = arith.constant 0 : index
    %8 = vector.load %arg3[%c0_6, %c0_7] : memref<80x5xf32, #tpu.memory_space<vmem>>, vector<80x5xf32>
    %cst_8 = arith.constant dense<0.000000e+00> : vector<8x5xf32>
    %9 = tpu.matmul %7, %8, %cst_8 {dimension_numbers = #tpu.dot_dimension_numbers<[1], [0], [0], [1], [0, 0, 1, 1], [], []>} : vector<8x80xf32>, vector<80x5xf32>, vector<8x5xf32> -> vector<8x5xf32>
    %c0_9 = arith.constant 0 : index
    %c0_10 = arith.constant 0 : index
    %10 = vector.load %arg4[%c0_9, %c0_10] : memref<1x5xf32, #tpu.memory_space<vmem>>, vector<1x5xf32>
    %11 = vector.broadcast %10 : vector<1x5xf32> to vector<8x5xf32>
    %12 = arith.addf %9, %11 : vector<8x5xf32>
    %13 = vector.extract_strided_slice %12 {offsets = [0, 0], sizes = [8, 1], strides = [1, 1]} : vector<8x5xf32> to vector<8x1xf32>
    %14 = vector.extract_strided_slice %12 {offsets = [0, 1], sizes = [8, 1], strides = [1, 1]} : vector<8x5xf32> to vector<8x1xf32>
    %15 = vector.extract_strided_slice %12 {offsets = [0, 2], sizes = [8, 1], strides = [1, 1]} : vector<8x5xf32> to vector<8x1xf32>
    %16 = vector.extract_strided_slice %12 {offsets = [0, 3], sizes = [8, 1], strides = [1, 1]} : vector<8x5xf32> to vector<8x1xf32>
    %17 = vector.extract_strided_slice %12 {offsets = [0, 4], sizes = [8, 1], strides = [1, 1]} : vector<8x5xf32> to vector<8x1xf32>
    %cst_11 = arith.constant 0.000000e+00 : f32
    %18 = vector.broadcast %cst_11 : f32 to vector<8x1xf32>
    %19 = arith.addf %18, %13 : vector<8x1xf32>
    %20 = arith.addf %19, %14 : vector<8x1xf32>
    %21 = arith.addf %20, %15 : vector<8x1xf32>
    %22 = arith.addf %21, %16 : vector<8x1xf32>
    %23 = arith.addf %22, %17 : vector<8x1xf32>
    %cst_12 = arith.constant 5.000000e+00 : f32
    %24 = vector.broadcast %cst_12 : f32 to vector<8x1xf32>
    %25 = arith.divf %23, %24 : vector<8x1xf32>
    %26 = arith.subf %13, %25 : vector<8x1xf32>
    %27 = arith.subf %13, %25 : vector<8x1xf32>
    %28 = arith.mulf %26, %27 : vector<8x1xf32>
    %cst_13 = arith.constant 0.000000e+00 : f32
    %29 = vector.broadcast %cst_13 : f32 to vector<8x1xf32>
    %30 = arith.addf %29, %28 : vector<8x1xf32>
    %31 = arith.subf %14, %25 : vector<8x1xf32>
    %32 = arith.subf %14, %25 : vector<8x1xf32>
    %33 = arith.mulf %31, %32 : vector<8x1xf32>
    %34 = arith.addf %30, %33 : vector<8x1xf32>
    %35 = arith.subf %15, %25 : vector<8x1xf32>
    %36 = arith.subf %15, %25 : vector<8x1xf32>
    %37 = arith.mulf %35, %36 : vector<8x1xf32>
    %38 = arith.addf %34, %37 : vector<8x1xf32>
    %39 = arith.subf %16, %25 : vector<8x1xf32>
    %40 = arith.subf %16, %25 : vector<8x1xf32>
    %41 = arith.mulf %39, %40 : vector<8x1xf32>
    %42 = arith.addf %38, %41 : vector<8x1xf32>
    %43 = arith.subf %17, %25 : vector<8x1xf32>
    %44 = arith.subf %17, %25 : vector<8x1xf32>
    %45 = arith.mulf %43, %44 : vector<8x1xf32>
    %46 = arith.addf %42, %45 : vector<8x1xf32>
    %cst_14 = arith.constant 4.000000e+00 : f32
    %47 = vector.broadcast %cst_14 : f32 to vector<8x1xf32>
    %48 = arith.divf %46, %47 : vector<8x1xf32>
    %49 = math.sqrt %48 : vector<8x1xf32>
    %50 = tpu.concatenate %25, %49 in 1 : vector<8x1xf32>, vector<8x1xf32> -> vector<8x2xf32>
    %c0_15 = arith.constant 0 : index
    %c0_16 = arith.constant 0 : index
    %51 = vector.load %arg5[%c0_15, %c0_16] : memref<8x2xf32, #tpu.memory_space<vmem>>, vector<8x2xf32>
    tpu.vector_store %arg5[%c0_15, %c0_16], %50 {strides = array<i32>} : memref<8x2xf32, #tpu.memory_space<vmem>>, vector<8x2xf32>,
    return
  }
}

</mosaic_0001>

<llo_original>
// kernel: tpu_custom_call.1
$region0: #{tpu_custom_call.1}
  #allocation0 [shape = 'u32[]', space=smem, size = 0x4, offset = 0x4, fixed_abs, tag = 'smem constant byte address 0x4 - core index']
  #allocation1 [shape = 'u32[144,128]{1,0:T(1,128)}', space=vmem, size = 0x12000, scoped, tag = 'internal scratch']
  %s0 = inlined_call_operand.vmem [shape: f32[8,32], index: 0, kind: input, shape index: {}]
  %s1 = inlined_call_operand.vmem [shape: f32[32,80], index: 1, kind: input, shape index: {}]
  %s2 = inlined_call_operand.vmem [shape: f32[1,80], index: 2, kind: input, shape index: {}]
  %s3 = inlined_call_operand.vmem [shape: f32[80,5], index: 3, kind: input, shape index: {}]
  %s4 = inlined_call_operand.vmem [shape: f32[1,5], index: 4, kind: input, shape index: {}]
  %s5 = inlined_call_operand.vmem [shape: f32[8,2], index: 5, kind: output, shape index: {}]
  %s6 = sld [smem:[#allocation0]]
  $region30: #{tpu_custom_call.1} parent=0
    _
  %s8 = ssub.s32 1, %s6
  %s9 = scalar_select 0, %s8, %s6
  // Predicated region
  $region2: #{tpu_custom_call.1} parent=0 // pred_check
    _
  $region3: #{tpu_custom_call.1} parent=0 // pred_check_branch
    %11 = sbr.rel (0) target = $region5
  $region4: #{tpu_custom_call.1} parent=0 // pred_region
    _
  $region5: #{tpu_custom_call.1} parent=0 // pred_fallthru
    _
  // Predicated region
  $region6: #{tpu_custom_call.1} parent=0 // pred_check
    _
  $region7: #{tpu_custom_call.1} parent=0 // pred_check_branch
    %13 = sbr.rel (0) target = $region9
  $region8: #{tpu_custom_call.1} parent=0 // pred_region
    _
  $region9: #{tpu_custom_call.1} parent=0 // pred_fallthru
    _
  // Predicated region
  $region10: #{tpu_custom_call.1} parent=0 // pred_check
    _
  $region11: #{tpu_custom_call.1} parent=0 // pred_check_branch
    %15 = sbr.rel (0) target = $region13
  $region12: #{tpu_custom_call.1} parent=0 // pred_region
    _
  $region13: #{tpu_custom_call.1} parent=0 // pred_fallthru
    _
  // Predicated region
  $region14: #{tpu_custom_call.1} parent=0 // pred_check
    _
  $region15: #{tpu_custom_call.1} parent=0 // pred_check_branch
    %17 = sbr.rel (0) target = $region17
  $region16: #{tpu_custom_call.1} parent=0 // pred_region
    _
  $region17: #{tpu_custom_call.1} parent=0 // pred_fallthru
    _
  // Predicated region
  $region18: #{tpu_custom_call.1} parent=0 // pred_check
    _
  $region19: #{tpu_custom_call.1} parent=0 // pred_check_branch
    %19 = sbr.rel (0) target = $region21
  $region20: #{tpu_custom_call.1} parent=0 // pred_region
    _
  $region21: #{tpu_custom_call.1} parent=0 // pred_fallthru
    _
  %v20 = vld [vmem:[%s0] sm:$0xff]
  %v21 = vld [vmem:[%s1] sm:$0xff]
  %v22 = vld [vmem:[%s1 + $0x8] sm:$0xff]
  %v23 = vld [vmem:[%s1 + $0x10] sm:$0xff]
  %v24 = vld [vmem:[%s1 + $0x18] sm:$0xff]
  %v25 = vld [vmem:[%s2] sm:$0x1]
  %v27 = vlaneseq
  %v28 = vshrl.u32 %v27, 7
  %v29 = vsub.s32 0, %v28
  %v30 = vrot.slane %v25, %v29
  %vm32 = vcmask 261120
  %v34 = vsel %vm32, %v20, 0
  %36 = vmatprep.subr.mxu0 0.0
  %37 = vmatpush1.msra.mxu0 %v21
  %38 = vmatprep.subr.mxu0 0.0
  %39 = vmatpush1.msra.mxu0 %v22
  %40 = vmatprep.subr.mxu0 0.0
  %41 = vmatpush1.msra.mxu0 %v23
  %42 = vmatprep.subr.mxu0 0.0
  %43 = vmatpush1.msra.mxu0 %v24
  %44 = vmatprep.subr.mxu0 0.0
  %45 = vmatpush1.msra.mxu0 0.0
  %46 = vmatprep.subr.mxu0 0.0
  %47 = vmatpush1.msra.mxu0 0.0
  %48 = vmatprep.subr.mxu0 0.0
  %49 = vmatpush1.msra.mxu0 0.0
  %50 = vmatprep.subr.mxu0 0.0
  %51 = vmatpush1.msra.mxu0 0.0
  %52 = vmatprep.subr.mxu0 0.0
  %53 = vmatpush1.msra.mxu0 0.0
  %54 = vmatprep.subr.mxu0 0.0
  %55 = vmatpush1.msra.mxu0 0.0
  %56 = vmatprep.subr.mxu0 0.0
  %57 = vmatpush1.msra.mxu0 0.0
  %58 = vmatprep.subr.mxu0 0.0
  %59 = vmatpush1.msra.mxu0 0.0
  %60 = vmatprep.subr.mxu0 0.0
  %61 = vmatpush1.msra.mxu0 0.0
  %62 = vmatprep.subr.mxu0 0.0
  %63 = vmatpush1.msra.mxu0 0.0
  %64 = vmatprep.subr.mxu0 0.0
  %65 = vmatpush1.msra.mxu0 0.0
  %66 = vmatprep.subr.mxu0 0.0
  %67 = vmatpush1.msra.mxu0 0.0
  %68 = vmatprep.subr.mxu0 0.0
  %69 = vmatpush1.msra.mxu0 0.0
  %70 = vmatprep.subr.mxu0 0.0
  %71 = vmatpush1.msra.mxu0 0.0
  %72 = vmatprep.subr.mxu0 0.0
  %73 = vmatpush1.msra.mxu0 0.0
  %74 = vmatprep.subr.mxu0 0.0
  %75 = vmatpush1.msra.mxu0 0.0
  %76 = vmatprep.subr.mxu0 0.0
  %77 = vmatpush1.msra.mxu0 0.0
  %78 = vmatprep.subr.mxu0 0.0
  %79 = vmatpush1.msra.mxu0 0.0
  %80 = vmatprep.subr.mxu0 0.0
  %81 = vmatpush1.msra.mxu0 0.0
  %82 = vmatprep.subr.mxu0 0.0
  %83 = vmatpush1.msra.mxu0 0.0
  %84 = vmatprep.subr.mxu0 0.0
  %85 = vmatpush1.msra.mxu0 0.0
  %86 = vmatprep.subr.mxu0 0.0
  %87 = vmatpush1.msra.mxu0 0.0
  %88 = vmatprep.subr.mxu0 0.0
  %89 = vmatpush1.msra.mxu0 0.0
  %90 = vmatprep.subr.mxu0 0.0
  %91 = vmatpush1.msra.mxu0 0.0
  %92 = vmatprep.subr.mxu0 0.0
  %93 = vmatpush1.msra.mxu0 0.0
  %94 = vmatprep.subr.mxu0 0.0
  %95 = vmatpush1.msra.mxu0 0.0
  %96 = vmatprep.subr.mxu0 0.0
  %97 = vmatpush1.msra.mxu0 0.0
  %98 = vmatprep.subr.mxu0 0.0
  %99 = vmatpush1.msra.mxu0 0.0
  %100 = vmatprep.mubr.f32.mxu0 0.0
  %101 = vmatmul.mubr.f32.gmra.mrb[0].mxu0 %v34
  %v102 = vpop.f32.mrb[0].mxu0
  %v103 = vadd.f32 %v30, %v102
  %v104 = vpop.f32.mrb[0].mxu0
  %105 = vdwg.mxu0
  %v106 = vmax.f32 %v103, 0.0
  %v107 = vld [vmem:[%s3] sm:$0xff]
  %v108 = vld [vmem:[%s3 + $0x8] sm:$0xff]
  %v109 = vld [vmem:[%s3 + $0x10] sm:$0xff]
  %v110 = vld [vmem:[%s3 + $0x18] sm:$0xff]
  %v111 = vld [vmem:[%s3 + $0x20] sm:$0xff]
  %v112 = vld [vmem:[%s3 + $0x28] sm:$0xff]
  %v113 = vld [vmem:[%s3 + $0x30] sm:$0xff]
  %v114 = vld [vmem:[%s3 + $0x38] sm:$0xff]
  %v115 = vld [vmem:[%s3 + $0x40] sm:$0xff]
  %v116 = vld [vmem:[%s3 + $0x48] sm:$0xff]
  %v117 = vld [vmem:[%s4] sm:$0x1]
  %v119 = vlaneseq
  %v120 = vshrl.u32 %v119, 7
  %v121 = vsub.s32 0, %v120
  %v122 = vrot.slane %v117, %v121
  %vm124 = vcmask 654336
  %v126 = vsel %vm124, %v106, 0
  %128 = vmatprep.subr.mxu0 0.0
  %129 = vmatpush1.msra.mxu0 %v107
  %130 = vmatprep.subr.mxu0 0.0
  %131 = vmatpush1.msra.mxu0 %v108
  %132 = vmatprep.subr.mxu0 0.0
  %133 = vmatpush1.msra.mxu0 %v109
  %134 = vmatprep.subr.mxu0 0.0
  %135 = vmatpush1.msra.mxu0 %v110
  %136 = vmatprep.subr.mxu0 0.0
  %137 = vmatpush1.msra.mxu0 %v111
  %138 = vmatprep.subr.mxu0 0.0
  %139 = vmatpush1.msra.mxu0 %v112
  %140 = vmatprep.subr.mxu0 0.0
  %141 = vmatpush1.msra.mxu0 %v113
  %142 = vmatprep.subr.mxu0 0.0
  %143 = vmatpush1.msra.mxu0 %v114
  %144 = vmatprep.subr.mxu0 0.0
  %145 = vmatpush1.msra.mxu0 %v115
  %146 = vmatprep.subr.mxu0 0.0
  %147 = vmatpush1.msra.mxu0 %v116
  %148 = vmatprep.subr.mxu0 0.0
  %149 = vmatpush1.msra.mxu0 0.0
  %150 = vmatprep.subr.mxu0 0.0
  %151 = vmatpush1.msra.mxu0 0.0
  %152 = vmatprep.subr.mxu0 0.0
  %153 = vmatpush1.msra.mxu0 0.0
  %154 = vmatprep.subr.mxu0 0.0
  %155 = vmatpush1.msra.mxu0 0.0
  %156 = vmatprep.subr.mxu0 0.0
  %157 = vmatpush1.msra.mxu0 0.0
  %158 = vmatprep.subr.mxu0 0.0
  %159 = vmatpush1.msra.mxu0 0.0
  %160 = vmatprep.subr.mxu0 0.0
  %161 = vmatpush1.msra.mxu0 0.0
  %162 = vmatprep.subr.mxu0 0.0
  %163 = vmatpush1.msra.mxu0 0.0
  %164 = vmatprep.subr.mxu0 0.0
  %165 = vmatpush1.msra.mxu0 0.0
  %166 = vmatprep.subr.mxu0 0.0
  %167 = vmatpush1.msra.mxu0 0.0
  %168 = vmatprep.subr.mxu0 0.0
  %169 = vmatpush1.msra.mxu0 0.0
  %170 = vmatprep.subr.mxu0 0.0
  %171 = vmatpush1.msra.mxu0 0.0
  %172 = vmatprep.subr.mxu0 0.0
  %173 = vmatpush1.msra.mxu0 0.0
  %174 = vmatprep.subr.mxu0 0.0
  %175 = vmatpush1.msra.mxu0 0.0
  %176 = vmatprep.subr.mxu0 0.0
  %177 = vmatpush1.msra.mxu0 0.0
  %178 = vmatprep.subr.mxu0 0.0
  %179 = vmatpush1.msra.mxu0 0.0
  %180 = vmatprep.subr.mxu0 0.0
  %181 = vmatpush1.msra.mxu0 0.0
  %182 = vmatprep.subr.mxu0 0.0
  %183 = vmatpush1.msra.mxu0 0.0
  %184 = vmatprep.subr.mxu0 0.0
  %185 = vmatpush1.msra.mxu0 0.0
  %186 = vmatprep.subr.mxu0 0.0
  %187 = vmatpush1.msra.mxu0 0.0
  %188 = vmatprep.subr.mxu0 0.0
  %189 = vmatpush1.msra.mxu0 0.0
  %190 = vmatprep.subr.mxu0 0.0
  %191 = vmatpush1.msra.mxu0 0.0
  %192 = vmatprep.mubr.f32.mxu0 0.0
  %193 = vmatmul.mubr.f32.gmra.mrb[0].mxu0 %v126
  %v194 = vpop.f32.mrb[0].mxu0
  %v195 = vadd.f32 %v122, %v194
  %v196 = vpop.f32.mrb[0].mxu0
  %197 = vdwg.mxu0
  %v198 = vadd.f32 %v195, 0.0
  %200 = vrot.lane.b32.xlu0 %v195, 127
  %v201 = vpop.permute.xlu0 %200
  %v203 = vadd.f32 %v198, %v201
  %204 = vrot.lane.b32.xlu0 %v195, 126
  %v205 = vpop.permute.xlu0 %204
  %v207 = vadd.f32 %v203, %v205
  %208 = vrot.lane.b32.xlu0 %v195, 125
  %v209 = vpop.permute.xlu0 %208
  %v211 = vadd.f32 %v207, %v209
  %212 = vrot.lane.b32.xlu0 %v195, 124
  %v213 = vpop.permute.xlu0 %212
  %v215 = vadd.f32 %v211, %v213
  %v216 = vrcp.pop 5.0
  %v217 = vmul.f32 %v215, %v216
  %v218 = vsub.f32 %v195, %v217
  %v219 = vmul.f32 %v218, %v218
  %v220 = vadd.f32 %v219, 0.0
  %222 = vrot.lane.b32.xlu0 %v217, 1
  %v223 = vpop.permute.xlu0 %222
  %v225 = vsub.f32 %v195, %v223
  %v226 = vmul.f32 %v225, %v225
  %228 = vrot.lane.b32.xlu0 %v226, 127
  %v229 = vpop.permute.xlu0 %228
  %v231 = vadd.f32 %v220, %v229
  %232 = vrot.lane.b32.xlu0 %v217, 2
  %v233 = vpop.permute.xlu0 %232
  %v235 = vsub.f32 %v195, %v233
  %v236 = vmul.f32 %v235, %v235
  %238 = vrot.lane.b32.xlu0 %v236, 126
  %v239 = vpop.permute.xlu0 %238
  %v241 = vadd.f32 %v231, %v239
  %242 = vrot.lane.b32.xlu0 %v217, 3
  %v243 = vpop.permute.xlu0 %242
  %v245 = vsub.f32 %v195, %v243
  %v246 = vmul.f32 %v245, %v245
  %248 = vrot.lane.b32.xlu0 %v246, 125
  %v249 = vpop.permute.xlu0 %248
  %v251 = vadd.f32 %v241, %v249
  %252 = vrot.lane.b32.xlu0 %v217, 4
  %v253 = vpop.permute.xlu0 %252
  %v255 = vsub.f32 %v195, %v253
  %v256 = vmul.f32 %v255, %v255
  %258 = vrot.lane.b32.xlu0 %v256, 124
  %v259 = vpop.permute.xlu0 %258
  %v261 = vadd.f32 %v251, %v259
  %v262 = vrcp.pop 4.0
  %v263 = vmul.f32 %v261, %v262
  %v264 = vrsqrt.pop %v263
  %v265 = vmul.f32 %v263, %v264
  %vm266 = vcmp.eq.f32.partialorder %v263, inf
  %v267 = vsel %vm266, %v263, %v265
  %vm268 = vcmp.eq.f32.partialorder %v263, 0.0
  %v269 = vand.u32 %v263, 2147483648
  %v270 = vsel %vm268, %v269, %v267
  %272 = vrot.lane.b32.xlu0 %v270, 1
  %v273 = vpop.permute.xlu0 %272
  %vm275 = vcmask 7168
  %v276 = vsel %vm275, %v217, %v273
  %vm277 = vcmask 15360
  %278 = vst.msk [vmem:[%s5] sm:$0xff] %vm277, %v276
  // Predicated region
  $region22: #{tpu_custom_call.1} parent=0 // pred_check
    _
  $region23: #{tpu_custom_call.1} parent=0 // pred_check_branch
    %280 = sbr.rel (0) target = $region25
  $region24: #{tpu_custom_call.1} parent=0 // pred_region
    _
  $region25: #{tpu_custom_call.1} parent=0 // pred_fallthru
    _
  // Predicated region
  $region26: #{tpu_custom_call.1} parent=0 // pred_check
    _
  $region27: #{tpu_custom_call.1} parent=0 // pred_check_branch
    %282 = sbr.rel (0) target = $region29
  $region28: #{tpu_custom_call.1} parent=0 // pred_region
    _
  $region29: #{tpu_custom_call.1} parent=0 // pred_fallthru
    _

</llo_original>
